<compile_context>
chip_gen: v7x
topology: tpu7x:2x2x1
jax: 0.10.0
libtpu: 0.0.40
codegen_flags: <defaults>
</compile_context>

<pallas_src>
import functools

import jax
import jax.numpy as jnp
from jax.experimental import pallas as pl
from jax.experimental.pallas import tpu as pltpu


def _cdiv(a: int, b: int) -> int:
    return -(-a // b)


def _round_up(x: int, m: int) -> int:
    return _cdiv(x, m) * m


def _make_accuracy_kernel(tile_r, cols, rows_padded, total_blocks, steps,
                          need_mask):
    def accuracy_kernel(pred_ref, true_ref, out_ref, acc_ref):
        p = pl.program_id(0)   # partial-count index ("parallel")
        i = pl.program_id(1)   # streaming step within the partial ("arbitrary")

        @pl.when(i == 0)
        def _init():
            acc_ref[...] = jnp.zeros_like(acc_ref)

        # elementwise equality (VPU); keep the lane axis — only sublane
        # partial sums per step, the cross-lane reduce happens once at the end
        eq = (pred_ref[...] == true_ref[...]).astype(jnp.int32)

        if need_mask:
            blk = p * steps + i

            @pl.when(blk < total_blocks - 1)
            def _acc_plain():
                acc_ref[...] += jnp.sum(eq, axis=0, keepdims=True)

            @pl.when(blk >= total_blocks - 1)
            def _acc_masked():
                # mask grid-overhang rows (stale VMEM garbage) and dead blocks
                # introduced by the partial-count split
                row_ids = jax.lax.broadcasted_iota(jnp.int32, (tile_r, cols), 0)
                valid = (blk * tile_r + row_ids) < rows_padded
                acc_ref[...] += jnp.sum(jnp.where(valid, eq, 0),
                                        axis=0, keepdims=True)
        else:
            acc_ref[...] += jnp.sum(eq, axis=0, keepdims=True)

        @pl.when(i == steps - 1)
        def _finalize():
            count = jnp.sum(acc_ref[...])                 # one cross-lane reduce
            out_ref[...] = jnp.broadcast_to(count, out_ref.shape)

    return accuracy_kernel


@functools.partial(jax.jit,
                   static_argnames=("cols", "max_tile_rows", "num_partials"))
def accuracy(y_pred: jax.Array, y_true: jax.Array, *,
             cols: int | None = None, max_tile_rows: int = 1024,
             num_partials: int = 2) -> jax.Array:
    """Pallas equivalent of Accuracy.forward. Returns a scalar float32."""
    assert y_pred.shape == y_true.shape and y_pred.ndim == 1
    assert y_pred.dtype == y_true.dtype, "labels must share a dtype"
    assert num_partials >= 1
    n = int(y_true.shape[0])

    itemsize = jnp.dtype(y_pred.dtype).itemsize
    # sublane-packing multiple: 8 for 4-byte, 16 for 2-byte, 32 for 1-byte
    sub_mult = max(8, (4 // itemsize) * 8)

    if cols is None:
        cols = 512 if n >= 4096 else 128
    assert cols % 128 == 0, "cols must be a multiple of 128 (lane axis)"
    assert max_tile_rows >= sub_mult

    rows = _cdiv(n, cols)
    rows_padded = _round_up(rows, sub_mult)          # round to 8/16/32 only
    tile_r = min(_round_up(max_tile_rows, sub_mult), rows_padded)
    assert tile_r % sub_mult == 0

    total_blocks = _cdiv(rows_padded, tile_r)
    steps = _cdiv(total_blocks, num_partials)
    need_mask = (rows_padded % tile_r != 0) or (steps * num_partials != total_blocks)

    pad = rows_padded * cols - n
    if pad:
        # sentinel pad (pred<-0, true<-1 never match) so the tail needs no
        # element mask; a lane/sublane-aligned n pads (and copies) nothing.
        y_pred = jnp.pad(y_pred, (0, pad), constant_values=0)
        y_true = jnp.pad(y_true, (0, pad), constant_values=1)

    pred2d = y_pred.reshape(rows_padded, cols)
    true2d = y_true.reshape(rows_padded, cols)

    def in_map(p, i):
        # clamp dead blocks (from the partial split) onto the last real block;
        # their contribution is masked to zero inside the kernel
        return (jnp.minimum(p * steps + i, total_blocks - 1), 0)

    partial_counts = pl.pallas_call(
        _make_accuracy_kernel(tile_r, cols, rows_padded, total_blocks, steps,
                              need_mask),
        out_shape=jax.ShapeDtypeStruct((num_partials, 1, 128), jnp.int32),
        grid_spec=pltpu.PrefetchScalarGridSpec(
            num_scalar_prefetch=0,
            grid=(num_partials, steps),
            in_specs=[
                pl.BlockSpec((tile_r, cols), in_map),
                pl.BlockSpec((tile_r, cols), in_map),
            ],
            # lane-dense int32 output, one row per partial count
            out_specs=pl.BlockSpec((1, 1, 128), lambda p, i: (p, 0, 0)),
            scratch_shapes=[pltpu.VMEM((1, cols), jnp.int32)],
        ),
        compiler_params=pltpu.CompilerParams(
            dimension_semantics=("parallel", "arbitrary"),
        ),
    )(pred2d, true2d)

    total = jnp.sum(partial_counts[:, 0, 0])         # exact int32 match count
    return total.astype(jnp.float32) / jnp.float32(n)


if __name__ == "__main__":
    key = jax.random.PRNGKey(0)
    k1, k2, k3, k4, k5, k6 = jax.random.split(key, 6)

    NUM_CLASSES = 4

    def ref_accuracy(yp, yt):
        return (yp == yt).sum().astype(jnp.float32) / jnp.float32(yp.shape[0])

    # 1) small case consistent with the module (batch of predicted labels)
    N_SMALL = 8
    yp = jax.random.randint(k1, (N_SMALL,), 0, NUM_CLASSES, dtype=jnp.int32)
    yt = jax.random.randint(k2, (N_SMALL,), 0, NUM_CLASSES, dtype=jnp.int32)
    acc = accuracy(yp, yt)
    jax.block_until_ready(acc)
    assert jnp.allclose(acc, ref_accuracy(yp, yt)), (acc, ref_accuracy(yp, yt))

    # 2) non-aligned N with small forced tiles: multi-block grid, sentinel
    #    padded tail, and the masked edge/dead-block branch
    N_ODD = 3000
    yp2 = jax.random.randint(k3, (N_ODD,), 0, NUM_CLASSES, dtype=jnp.int32)
    yt2 = jax.random.randint(k4, (N_ODD,), 0, NUM_CLASSES, dtype=jnp.int32)
    acc2 = accuracy(yp2, yt2, cols=128, max_tile_rows=16)
    jax.block_until_ready(acc2)
    assert jnp.allclose(acc2, ref_accuracy(yp2, yt2)), (acc2, ref_accuracy(yp2, yt2))

    # 3) lane/sublane-aligned N, single partial: no pad copy, no mask branch
    N_ALIGNED = 4096
    yp3 = jax.random.randint(k5, (N_ALIGNED,), 0, NUM_CLASSES, dtype=jnp.int32)
    yt3 = jax.random.randint(k6, (N_ALIGNED,), 0, NUM_CLASSES, dtype=jnp.int32)
    acc3 = accuracy(yp3, yt3, num_partials=1)
    jax.block_until_ready(acc3)
    assert jnp.allclose(acc3, ref_accuracy(yp3, yt3)), (acc3, ref_accuracy(yp3, yt3))

    # 4) narrow label dtype (int16) taken end-to-end without casting
    yp4 = yp2.astype(jnp.int16)
    yt4 = yt2.astype(jnp.int16)
    acc4 = accuracy(yp4, yt4)
    jax.block_until_ready(acc4)
    assert jnp.allclose(acc4, ref_accuracy(yp4, yt4)), (acc4, ref_accuracy(yp4, yt4))

    print("KERNEL_OK")
</pallas_src>

<mosaic_0001>
module attributes {stable_mosaic.version = 11 : i64} {
  func.func @accuracy_kernel(%arg0: i32, %arg1: i32, %arg2: memref<8x128xi32, #tpu.memory_space<vmem>>, %arg3: memref<8x128xi32, #tpu.memory_space<vmem>>, %arg4: memref<1x1x128xi32, #tpu.memory_space<vmem>>, %arg5: memref<1x128xi32, #tpu.memory_space<vmem>>) attributes {dimension_semantics = [#tpu.dimension_semantics<parallel>, #tpu.dimension_semantics<arbitrary>], iteration_bounds = array<i64: 2, 1>, scalar_prefetch = 0 : i64, scratch_operands = 1 : i64, tpu.core_type = #tpu.core_type<tc>, window_params = [{transform_indices = @transform_0, window_bounds = array<i64: 8, 128>}, {transform_indices = @transform_1, window_bounds = array<i64: 8, 128>}, {transform_indices = @transform_2, window_bounds = array<i64: 1, 1, 128>}]} {
    %c0_i32 = arith.constant 0 : i32
    %0 = arith.cmpi eq, %arg1, %c0_i32 : i32
    %1 = arith.extui %0 : i1 to i32
    %c0_i32_0 = arith.constant 0 : i32
    %2 = arith.cmpi ne, %1, %c0_i32_0 : i32
    scf.if %2 {
      %c0_i32_10 = arith.constant 0 : i32
      %18 = vector.broadcast %c0_i32_10 : i32 to vector<1x128xi32>
      %c0_11 = arith.constant 0 : index
      %c0_12 = arith.constant 0 : index
      %19 = vector.load %arg5[%c0_11, %c0_12] : memref<1x128xi32, #tpu.memory_space<vmem>>, vector<1x128xi32>
      tpu.vector_store %arg5[%c0_11, %c0_12], %18 {strides = array<i32>} : memref<1x128xi32, #tpu.memory_space<vmem>>, vector<1x128xi32>,
    } else {
    }
    %c0 = arith.constant 0 : index
    %c0_1 = arith.constant 0 : index
    %3 = vector.load %arg2[%c0, %c0_1] : memref<8x128xi32, #tpu.memory_space<vmem>>, vector<8x128xi32>
    %c0_2 = arith.constant 0 : index
    %c0_3 = arith.constant 0 : index
    %4 = vector.load %arg3[%c0_2, %c0_3] : memref<8x128xi32, #tpu.memory_space<vmem>>, vector<8x128xi32>
    %5 = arith.cmpi eq, %3, %4 : vector<8x128xi32>
    %6 = arith.extui %5 : vector<8x128xi1> to vector<8x128xi32>
    %c1_i32 = arith.constant 1 : i32
    %7 = arith.muli %arg0, %c1_i32 : i32
    %8 = arith.addi %7, %arg1 : i32
    %c0_i32_4 = arith.constant 0 : i32
    %9 = arith.cmpi slt, %8, %c0_i32_4 : i32
    %10 = arith.extui %9 : i1 to i32
    %c0_i32_5 = arith.constant 0 : i32
    %11 = arith.cmpi ne, %10, %c0_i32_5 : i32
    scf.if %11 {
      %c0_10 = arith.constant 0 : index
      %c0_11 = arith.constant 0 : index
      %18 = vector.load %arg5[%c0_10, %c0_11] : memref<1x128xi32, #tpu.memory_space<vmem>>, vector<1x128xi32>
      %cst = arith.constant dense<0> : vector<128xi32>
      %19 = vector.multi_reduction <add>, %6, %cst [0] : vector<8x128xi32> to vector<128xi32>
      %20 = vector.shape_cast %19 : vector<128xi32> to vector<1x128xi32>
      %21 = arith.addi %18, %20 : vector<1x128xi32>
      %c0_12 = arith.constant 0 : index
      %c0_13 = arith.constant 0 : index
      %22 = vector.load %arg5[%c0_12, %c0_13] : memref<1x128xi32, #tpu.memory_space<vmem>>, vector<1x128xi32>
      tpu.vector_store %arg5[%c0_12, %c0_13], %21 {strides = array<i32>} : memref<1x128xi32, #tpu.memory_space<vmem>>, vector<1x128xi32>,
    } else {
    }
    %c0_i32_6 = arith.constant 0 : i32
    %12 = arith.cmpi sge, %8, %c0_i32_6 : i32
    %13 = arith.extui %12 : i1 to i32
    %c0_i32_7 = arith.constant 0 : i32
    %14 = arith.cmpi ne, %13, %c0_i32_7 : i32
    scf.if %14 {
      %18 = tpu.iota {dimensions = array<i32: 0>} : vector<8x128xi32>
      %c8_i32 = arith.constant 8 : i32
      %19 = arith.muli %8, %c8_i32 : i32
      %20 = vector.broadcast %19 : i32 to vector<8x128xi32>
      %21 = arith.addi %20, %18 : vector<8x128xi32>
      %c8_i32_10 = arith.constant 8 : i32
      %22 = vector.broadcast %c8_i32_10 : i32 to vector<8x128xi32>
      %23 = arith.cmpi slt, %21, %22 : vector<8x128xi32>
      %c0_11 = arith.constant 0 : index
      %c0_12 = arith.constant 0 : index
      %24 = vector.load %arg5[%c0_11, %c0_12] : memref<1x128xi32, #tpu.memory_space<vmem>>, vector<1x128xi32>
      %c0_i32_13 = arith.constant 0 : i32
      %25 = vector.broadcast %c0_i32_13 : i32 to vector<8x128xi32>
      %26 = arith.select %23, %6, %25 : vector<8x128xi1>, vector<8x128xi32>
      %cst = arith.constant dense<0> : vector<128xi32>
      %27 = vector.multi_reduction <add>, %26, %cst [0] : vector<8x128xi32> to vector<128xi32>
      %28 = vector.shape_cast %27 : vector<128xi32> to vector<1x128xi32>
      %29 = arith.addi %24, %28 : vector<1x128xi32>
      %c0_14 = arith.constant 0 : index
      %c0_15 = arith.constant 0 : index
      %30 = vector.load %arg5[%c0_14, %c0_15] : memref<1x128xi32, #tpu.memory_space<vmem>>, vector<1x128xi32>
      tpu.vector_store %arg5[%c0_14, %c0_15], %29 {strides = array<i32>} : memref<1x128xi32, #tpu.memory_space<vmem>>, vector<1x128xi32>,
    } else {
    }
    %c0_i32_8 = arith.constant 0 : i32
    %15 = arith.cmpi eq, %arg1, %c0_i32_8 : i32
    %16 = arith.extui %15 : i1 to i32
    %c0_i32_9 = arith.constant 0 : i32
    %17 = arith.cmpi ne, %16, %c0_i32_9 : i32
    scf.if %17 {
      %c0_10 = arith.constant 0 : index
      %c0_11 = arith.constant 0 : index
      %18 = vector.load %arg5[%c0_10, %c0_11] : memref<1x128xi32, #tpu.memory_space<vmem>>, vector<1x128xi32>
      %19 = vector.shape_cast %18 : vector<1x128xi32> to vector<1x1x128xi32>
      %cst = arith.constant dense<0> : vector<1xi32>
      %20 = vector.multi_reduction <add>, %19, %cst [1, 2] : vector<1x1x128xi32> to vector<1xi32>
      %21 = vector.shape_cast %20 : vector<1xi32> to vector<1x1x1xi32>
      %22 = vector.extract %21[0, 0, 0] : i32 from vector<1x1x1xi32>
      %23 = vector.broadcast %22 : i32 to vector<1x1x128xi32>
      %c0_12 = arith.constant 0 : index
      %c0_13 = arith.constant 0 : index
      %c0_14 = arith.constant 0 : index
      %24 = vector.load %arg4[%c0_12, %c0_13, %c0_14] : memref<1x1x128xi32, #tpu.memory_space<vmem>>, vector<1x1x128xi32>
      tpu.vector_store %arg4[%c0_12, %c0_13, %c0_14], %23 {strides = array<i32>} : memref<1x1x128xi32, #tpu.memory_space<vmem>>, vector<1x1x128xi32>,
    } else {
    }
    return
  }
  func.func @transform_0(%arg0: i32, %arg1: i32) -> (i32, i32) {
    %c1_i32 = arith.constant 1 : i32
    %0 = arith.muli %arg0, %c1_i32 : i32
    %1 = arith.addi %0, %arg1 : i32
    %c0_i32 = arith.constant 0 : i32
    %2 = arith.minsi %1, %c0_i32 : i32
    %c0_i32_0 = arith.constant 0 : i32
    %c0_i32_1 = arith.constant 0 : i32
    return %2, %c0_i32_0 : i32, i32
  }
  func.func @transform_1(%arg0: i32, %arg1: i32) -> (i32, i32) {
    %c1_i32 = arith.constant 1 : i32
    %0 = arith.muli %arg0, %c1_i32 : i32
    %1 = arith.addi %0, %arg1 : i32
    %c0_i32 = arith.constant 0 : i32
    %2 = arith.minsi %1, %c0_i32 : i32
    %c0_i32_0 = arith.constant 0 : i32
    %c0_i32_1 = arith.constant 0 : i32
    return %2, %c0_i32_0 : i32, i32
  }
  func.func @transform_2(%arg0: i32, %arg1: i32) -> (i32, i32, i32) {
    %c0_i32 = arith.constant 0 : i32
    %c0_i32_0 = arith.constant 0 : i32
    %c0_i32_1 = arith.constant 0 : i32
    return %arg0, %c0_i32, %c0_i32_0 : i32, i32, i32
  }
}

</mosaic_0001>

<llo_original>
// kernel: accuracy.1
$region0: #{accuracy.1}
  #allocation0 [shape = 'u32[]', space=smem, size = 0x4, offset = 0x4, fixed_abs, tag = 'smem constant byte address 0x4 - core index']
  #allocation1 [shape = 'u32[144,128]{1,0:T(1,128)}', space=vmem, size = 0x12000, scoped, tag = 'internal scratch']
  #allocation2 [shape = 's32[1,128]{1,0:T(1,128)}', space=vmem, size = 0x200, scoped, tag = 'scratch operand']
  %s0 = inlined_call_operand.vmem [shape: s32[8,128], index: 0, kind: input, shape index: {}]
  %s1 = inlined_call_operand.vmem [shape: s32[8,128], index: 1, kind: input, shape index: {}]
  %s2 = inlined_call_operand.vmem [shape: s32[2,1,128], index: 2, kind: output, shape index: {}]
  %s3 = sld [smem:[#allocation0]]
  $region57: #{accuracy.1} parent=0
    _
  %s5 = ssub.s32 1, %s3
  %s6 = scalar_select 0, %s5, %s3
  loop: start=0, step=1, limit=4
  $region2: #{accuracy.1} parent=0 // loop_pre_header
    _
  $region3: #{accuracy.1} parent=0 // loop_header
    %s8 = sphi 0, %s12
    %p9 = scmp.ge.s32.totalorder %s8, 4
    %s15 = sphi 0, %s27
    %s16 = sphi 0, %s23
    %s17 = sphi 0, %s15
    %s18 = sphi 0, %s16
    %s19 = sphi 0, %s17
    %s20 = sphi 0, %s18
    %s36 = sphi 0, %s38
    %s39 = sphi 0, %s36
    %s40 = sphi 0, %s39
    %s56 = sphi 0, %s40
    %s68 = sphi 0, %s70
    %s71 = sphi 0, %s68
    %s72 = sphi 0, %s71
    %s88 = sphi 0, %s72
    %s94 = sphi 0, %s96
    %s97 = sphi 0, %s94
    %s98 = sphi 0, %s97
    %s114 = sphi 0, %s98
  $region4: #{accuracy.1} parent=0 // loop_header_branch
    %11 = sbr.rel (%p9) target = $region8
  $region5: #{accuracy.1} parent=0 // loop_body
    %s13 = ssub.s32 %s8, 1
    %s14 = ssub.s32 %s8, 2
    %s21 = sadd.s32 1, %s16
    %p22 = scmp.ge.s32.totalorder %s21, 1
    %s23 = scalar_select %p22, 0, %s21
    %s24 = sadd.s32 1, %s15
    %s25 = scalar_select %p22, %s24, %s15
    %p26 = scmp.ge.s32.totalorder %s25, 2
    %s27 = scalar_select %p26, 0, %s25
    %s28 = sadd.s32 %s15, %s16
    %p29 = scmp.lt.s32.totalorder %s28, 0
    %s30 = scalar_select %p29, %s28, 0
    %s31 = sadd.s32 %s27, %s23
    %p32 = scmp.lt.s32.totalorder %s31, 0
    %s33 = scalar_select %p32, %s31, 0
    %s34 = ssub.s32 %s30, %s33
    %p35 = scmp.eq.s32.totalorder %s34, 0
    %s37 = sadd.s32 %s36, 1
    %s38 = scalar_select %p35, %s36, %s37
    %p41 = pneg %p35
    %p42 = scmp.eq.s32.totalorder %s8, 1
    %p43 = por %p41, %p42
    %p44 = scmp.ne.s32.totalorder %s36, %s39
    %p45 = scmp.eq.s32.totalorder %s8, 0
    %p46 = por %p44, %p45
    %p47 = scmp.ne.s32.totalorder %s36, %s39
    %p48 = scmp.eq.s32.totalorder %s13, 1
    %p49 = por %p47, %p48
    %p50 = scmp.ne.s32.totalorder %s39, %s40
    %p51 = scmp.eq.s32.totalorder %s13, 0
    %p52 = por %p50, %p51
    %p53 = scmp.ne.s32.totalorder %s39, %s40
    %p54 = scmp.eq.s32.totalorder %s14, 1
    %p55 = por %p53, %p54
    %p57 = scmp.ne.s32.totalorder %s40, %s56
    %p58 = scmp.eq.s32.totalorder %s14, 0
    %p59 = por %p57, %p58
    %s60 = sadd.s32 %s15, %s16
    %p61 = scmp.lt.s32.totalorder %s60, 0
    %s62 = scalar_select %p61, %s60, 0
    %s63 = sadd.s32 %s27, %s23
    %p64 = scmp.lt.s32.totalorder %s63, 0
    %s65 = scalar_select %p64, %s63, 0
    %s66 = ssub.s32 %s62, %s65
    %p67 = scmp.eq.s32.totalorder %s66, 0
    %s69 = sadd.s32 %s68, 1
    %s70 = scalar_select %p67, %s68, %s69
    %p73 = pneg %p67
    %p74 = scmp.eq.s32.totalorder %s8, 1
    %p75 = por %p73, %p74
    %p76 = scmp.ne.s32.totalorder %s68, %s71
    %p77 = scmp.eq.s32.totalorder %s8, 0
    %p78 = por %p76, %p77
    %p79 = scmp.ne.s32.totalorder %s68, %s71
    %p80 = scmp.eq.s32.totalorder %s13, 1
    %p81 = por %p79, %p80
    %p82 = scmp.ne.s32.totalorder %s71, %s72
    %p83 = scmp.eq.s32.totalorder %s13, 0
    %p84 = por %p82, %p83
    %p85 = scmp.ne.s32.totalorder %s71, %s72
    %p86 = scmp.eq.s32.totalorder %s14, 1
    %p87 = por %p85, %p86
    %p89 = scmp.ne.s32.totalorder %s72, %s88
    %p90 = scmp.eq.s32.totalorder %s14, 0
    %p91 = por %p89, %p90
    %s92 = ssub.s32 %s15, %s27
    %p93 = scmp.eq.s32.totalorder %s92, 0
    %s95 = sadd.s32 %s94, 1
    %s96 = scalar_select %p93, %s94, %s95
    %p99 = pneg %p93
    %p100 = scmp.eq.s32.totalorder %s8, 1
    %p101 = por %p99, %p100
    %p102 = scmp.ne.s32.totalorder %s94, %s97
    %p103 = scmp.eq.s32.totalorder %s8, 0
    %p104 = por %p102, %p103
    %p105 = scmp.ne.s32.totalorder %s94, %s97
    %p106 = scmp.eq.s32.totalorder %s13, 1
    %p107 = por %p105, %p106
    %p108 = scmp.ne.s32.totalorder %s97, %s98
    %p109 = scmp.eq.s32.totalorder %s13, 0
    %p110 = por %p108, %p109
    %p111 = scmp.ne.s32.totalorder %s97, %s98
    %p112 = scmp.eq.s32.totalorder %s14, 1
    %p113 = por %p111, %p112
    %p115 = scmp.ne.s32.totalorder %s98, %s114
    %p116 = scmp.eq.s32.totalorder %s14, 0
    %p117 = por %p115, %p116
    %p118 = scmp.le.s32.totalorder 1, %s8
    %p119 = scmp.lt.s32.totalorder %s8, 3
    %p120 = pnand %p118, %p119
    %p121 = pneg %p120
    // Predicated region
    $region9: #{accuracy.1} parent=5 // pred_check
      _
    $region10: #{accuracy.1} parent=5 // pred_check_branch
      %123 = sbr.rel (%p120) target = $region12
    $region11: #{accuracy.1} parent=5 // pred_region
      %s124 = ssub.s32 %s8, 1
    $region12: #{accuracy.1} parent=5 // pred_fallthru
      _
    %p125 = scmp.lt.s32.totalorder %s8, 2
    // Predicated region
    $region13: #{accuracy.1} parent=5 // pred_check
      %p126 = pneg %p125
    $region14: #{accuracy.1} parent=5 // pred_check_branch
      %128 = sbr.rel (%p126) target = $region16
    $region15: #{accuracy.1} parent=5 // pred_region
      // Predicated region
      $region17: #{accuracy.1} parent=15 // pred_check
        %p129 = pneg %p46
      $region18: #{accuracy.1} parent=15 // pred_check_branch
        %131 = sbr.rel (%p129) target = $region20
      $region19: #{accuracy.1} parent=15 // pred_region
        %s132 = sadd.s32 %s15, %s16
        %p133 = scmp.lt.s32.totalorder %s132, 0
        %s134 = scalar_select %p133, %s132, 0
        %p135 = scmp.lt.s32.totalorder %s134, 0
        %s136 = scalar_select %p135, %s134, 0
        %s137 = smul.addr %s136, 8
        %s138 = scalar_lea.vmem %s0, %s137
        %s139 = sadd.s32 %s15, %s16
        %p140 = scmp.lt.s32.totalorder %s139, 0
        %s141 = scalar_select %p140, %s139, 0
      $region20: #{accuracy.1} parent=15 // pred_fallthru
        _
      // Predicated region
      $region21: #{accuracy.1} parent=15 // pred_check
        %p142 = pneg %p78
      $region22: #{accuracy.1} parent=15 // pred_check_branch
        %144 = sbr.rel (%p142) target = $region24
      $region23: #{accuracy.1} parent=15 // pred_region
        %s145 = sadd.s32 %s15, %s16
        %p146 = scmp.lt.s32.totalorder %s145, 0
        %s147 = scalar_select %p146, %s145, 0
        %p148 = scmp.lt.s32.totalorder %s147, 0
        %s149 = scalar_select %p148, %s147, 0
        %s150 = smul.addr %s149, 8
        %s151 = scalar_lea.vmem %s1, %s150
        %s152 = sadd.s32 %s15, %s16
        %p153 = scmp.lt.s32.totalorder %s152, 0
        %s154 = scalar_select %p153, %s152, 0
      $region24: #{accuracy.1} parent=15 // pred_fallthru
        _
    $region16: #{accuracy.1} parent=5 // pred_fallthru
      _
    %p155 = scmp.le.s32.totalorder 1, %s8
    %p156 = scmp.lt.s32.totalorder %s8, 3
    %p157 = pnand %p155, %p156
    %p158 = pneg %p157
    // Predicated region
    $region25: #{accuracy.1} parent=5 // pred_check
      _
    $region26: #{accuracy.1} parent=5 // pred_check_branch
      %160 = sbr.rel (%p157) target = $region28
    $region27: #{accuracy.1} parent=5 // pred_region
      %s161 = ssub.s32 %s8, 1
      %s162 = sadd.s32 %s17, %s18
      %p163 = scmp.lt.s32.totalorder %s162, 0
      %s164 = scalar_select %p163, %s162, 0
      %p165 = scmp.lt.s32.totalorder %s164, 0
      %s166 = scalar_select %p165, %s164, 0
      %s167 = smul.addr %s166, 8
      %s168 = scalar_lea.vmem %s0, %s167
      %p169 = pneg %p52
      %p170 = pneg %p49
      %s171 = sadd.s32 %s17, %s18
      %p172 = scmp.lt.s32.totalorder %s171, 0
      %s173 = scalar_select %p172, %s171, 0
      %p174 = scmp.lt.s32.totalorder %s173, 0
      %s175 = scalar_select %p174, %s173, 0
      %s176 = smul.addr %s175, 8
      %s177 = scalar_lea.vmem %s1, %s176
      %p178 = pneg %p84
      %p179 = pneg %p81
      %p180 = pneg %p110
      %p181 = pneg %p107
      %p182 = scmp.lt.s32.totalorder %s17, 1
      %s183 = scalar_select %p182, %s17, 1
      %s184 = scalar_lea.vmem %s2, %s183
      %s185 = sadd.s32 %s17, %s18
      %p186 = scmp.lt.s32.totalorder %s185, 0
      %s187 = scalar_select %p186, %s185, 0
      %p188 = scmp.lt.s32.totalorder %s187, 0
      %s189 = scalar_select %p188, %s187, 0
      %s190 = smul.addr %s189, 8
      %s191 = scalar_lea.vmem %s0, %s190
      %s192 = sadd.s32 %s17, %s18
      %p193 = scmp.lt.s32.totalorder %s192, 0
      %s194 = scalar_select %p193, %s192, 0
      %s195 = sadd.s32 %s17, %s18
      %p196 = scmp.lt.s32.totalorder %s195, 0
      %s197 = scalar_select %p196, %s195, 0
      %p198 = scmp.lt.s32.totalorder %s197, 0
      %s199 = scalar_select %p198, %s197, 0
      %s200 = smul.addr %s199, 8
      %s201 = scalar_lea.vmem %s1, %s200
      %s202 = sadd.s32 %s17, %s18
      %p203 = scmp.lt.s32.totalorder %s202, 0
      %s204 = scalar_select %p203, %s202, 0
      %p205 = scmp.lt.s32.totalorder %s17, 1
      %s206 = scalar_select %p205, %s17, 1
      %s207 = scalar_lea.vmem %s2, %s206
      %p208 = scmp.eq.s32.totalorder %s18, 0
      // Predicated region
      $region29: #{accuracy.1} parent=27 // pred_check
        %p209 = pneg %p208
      $region30: #{accuracy.1} parent=27 // pred_check_branch
        %211 = sbr.rel (%p209) target = $region32
      $region31: #{accuracy.1} parent=27 // pred_region
        %212 = vst [vmem:[#allocation2] sm:$0x1] 0
      $region32: #{accuracy.1} parent=27 // pred_fallthru
        _
      %v213 = vld [vmem:[%s191] sm:$0xff]
      %v214 = vld [vmem:[%s201] sm:$0xff]
      %vm215 = vcmp.eq.s32.totalorder %v213, %v214
      %v216 = vsel %vm215, 1, 0
      %s217 = sadd.s32 %s17, %s18
      %p218 = scmp.lt.s32.totalorder %s217, 0
      // Predicated region
      $region33: #{accuracy.1} parent=27 // pred_check
        %p219 = pneg %p218
      $region34: #{accuracy.1} parent=27 // pred_check_branch
        %221 = sbr.rel (%p219) target = $region36
      $region35: #{accuracy.1} parent=27 // pred_region
        %v222 = vld [vmem:[#allocation2] sm:$0x1]
        %v223 = vrot.slane %v216, 4
        %v224 = vadd.s32 %v216, %v223
        %v225 = vrot.slane %v224, 2
        %v226 = vadd.s32 %v224, %v225
        %v227 = vrot.slane %v226, 1
        %v228 = vadd.s32 %v226, %v227
        %v229 = vadd.s32 %v222, %v228
        %230 = vst [vmem:[#allocation2] sm:$0x1] %v229
      $region36: #{accuracy.1} parent=27 // pred_fallthru
        _
      %p231 = scmp.ge.s32.totalorder %s217, 0
      // Predicated region
      $region37: #{accuracy.1} parent=27 // pred_check
        %p232 = pneg %p231
      $region38: #{accuracy.1} parent=27 // pred_check_branch
        %234 = sbr.rel (%p232) target = $region40
      $region39: #{accuracy.1} parent=27 // pred_region
        %v235 = vlaneseq
        %v236 = vshrl.u32 %v235, 7
        %s237 = smul.u32 %s217, 8
        %v238 = vstv %s237
        %v239 = vadd.s32 %v238, %v236
        %vm240 = vcmp.lt.s32.totalorder %v239, 8
        %v241 = vld [vmem:[#allocation2] sm:$0x1]
        %v242 = vsel %vm240, %v216, 0
        %v243 = vrot.slane %v242, 4
        %v244 = vadd.s32 %v242, %v243
        %v245 = vrot.slane %v244, 2
        %v246 = vadd.s32 %v244, %v245
        %v247 = vrot.slane %v246, 1
        %v248 = vadd.s32 %v246, %v247
        %v249 = vadd.s32 %v241, %v248
        %250 = vst [vmem:[#allocation2] sm:$0x1] %v249
      $region40: #{accuracy.1} parent=27 // pred_fallthru
        _
      // Predicated region
      $region41: #{accuracy.1} parent=27 // pred_check
        %p251 = pneg %p208
      $region42: #{accuracy.1} parent=27 // pred_check_branch
        %253 = sbr.rel (%p251) target = $region44
      $region43: #{accuracy.1} parent=27 // pred_region
        %v254 = vld [vmem:[#allocation2] sm:$0x1]
        %vm255 = vcmask 1040384
        %v256 = vsel %vm255, %v254, 0
        %v257 = vand.u32 %v256, 65535
        %v258 = vshrl.u32 %v256, 16
        %v259 = vcvt.s32.f32 %v257
        %v260 = vcvt.s32.f32 %v258
        %261 = vadd.xlane.f32.xlu0 %v259
        %v262 = vpop.xlane.xlu0 %261
        %263 = vadd.xlane.f32.xlu0 %v260
        %v264 = vpop.xlane.xlu0 %263
        %v265 = vcvt.f32.s32 %v262
        %v266 = vcvt.f32.s32 %v264
        %v267 = vshll.u32 %v266, 16
        %v268 = vadd.s32 %v267, %v265
        %v269 = vrot.slane %v268, 4
        %v270 = vadd.s32 %v268, %v269
        %v271 = vrot.slane %v270, 2
        %v272 = vadd.s32 %v270, %v271
        %v273 = vrot.slane %v272, 1
        %v274 = vadd.s32 %v272, %v273
        %s275 = vtos %v274
        %v276 = vstv %s275
        %277 = vst [vmem:[%s207] sm:$0x1] %v276
      $region44: #{accuracy.1} parent=27 // pred_fallthru
        _
      %p278 = scmp.lt.s32.totalorder %s17, 1
      %s279 = scalar_select %p278, %s17, 1
      %s280 = scalar_lea.vmem %s2, %s279
      // Predicated region
      $region45: #{accuracy.1} parent=27 // pred_check
        %p281 = pneg %p107
      $region46: #{accuracy.1} parent=27 // pred_check_branch
        %283 = sbr.rel (%p281) target = $region48
      $region47: #{accuracy.1} parent=27 // pred_region
        _
      $region48: #{accuracy.1} parent=27 // pred_fallthru
        _
    $region28: #{accuracy.1} parent=5 // pred_fallthru
      _
    %p284 = scmp.le.s32.totalorder 2, %s8
    // Predicated region
    $region49: #{accuracy.1} parent=5 // pred_check
      %p285 = pneg %p284
    $region50: #{accuracy.1} parent=5 // pred_check_branch
      %287 = sbr.rel (%p285) target = $region52
    $region51: #{accuracy.1} parent=5 // pred_region
      %s288 = ssub.s32 %s8, 2
      // Predicated region
      $region53: #{accuracy.1} parent=51 // pred_check
        %p289 = pneg %p113
      $region54: #{accuracy.1} parent=51 // pred_check_branch
        %291 = sbr.rel (%p289) target = $region56
      $region55: #{accuracy.1} parent=51 // pred_region
        %p292 = scmp.lt.s32.totalorder %s19, 1
        %s293 = scalar_select %p292, %s19, 1
        %s294 = scalar_lea.vmem %s2, %s293
      $region56: #{accuracy.1} parent=51 // pred_fallthru
        _
    $region52: #{accuracy.1} parent=5 // pred_fallthru
      _
  $region6: #{accuracy.1} parent=0 // loop_footer
    %s12 = sadd.s32 1, %s8
  $region7: #{accuracy.1} parent=0 // loop_footer_branch
    %7 = sbr.rel target = $region3
  $region8: #{accuracy.1} parent=0 // loop_exit
    _

</llo_original>
